<compile_context>
chip_gen: v5e
topology: v5e:2x2
jax: 0.10.0
libtpu: 0.0.40
codegen_flags: <defaults>
</compile_context>

<pallas_src>
import jax
import jax.numpy as jnp
from jax.experimental import pallas as pl
from jax.experimental.pallas import tpu as pltpu


def _round_up(x, m):
    return ((x + m - 1) // m) * m


# ----------------------------- kernels --------------------------------------


def _linear_bias_kernel(x_ref, w_ref, b_ref, o_ref):
    # Whole K reduction in one block: no scratch, no phase gating.
    o_ref[...] = (
        jnp.dot(x_ref[...], w_ref[...], preferred_element_type=jnp.float32)
        + b_ref[...]
    ).astype(o_ref.dtype)


def _linear_bias_kernel_ksplit(x_ref, w_ref, b_ref, o_ref):
    # K split over grid axis 2 (innermost, "arbitrary").  The output block
    # index is constant in k, so the f32 o_ref stays resident in VMEM and is
    # the accumulator itself; bias is folded into the k==0 initialization.
    k = pl.program_id(2)

    @pl.when(k == 0)
    def _():
        o_ref[...] = jnp.broadcast_to(b_ref[...], o_ref.shape)

    o_ref[...] += jnp.dot(
        x_ref[...], w_ref[...], preferred_element_type=jnp.float32
    )


# ----------------------- one-time parameter prep ----------------------------


def prepare_lg_classifier(weight, bias, *, tk_cap=2048, to_cap=512):
    """Pad / transpose / cast the nn.Linear parameters once (not per call).

    weight: (nlabel, feature_size)  -- PyTorch nn.Linear layout
    bias:   (nlabel,)
    """
    nlabel, K = weight.shape
    tk = min(tk_cap, _round_up(K, 128))
    to = min(to_cap, _round_up(nlabel, 128))
    K_pad = _round_up(K, tk)
    O_pad = _round_up(nlabel, to)

    w_t = jnp.pad(
        weight.astype(jnp.bfloat16).T, ((0, K_pad - K), (0, O_pad - nlabel))
    )  # (K_pad, O_pad) bf16, persistent
    b = jnp.pad(
        bias.astype(jnp.float32).reshape(1, nlabel),
        ((0, 0), (0, O_pad - nlabel)),
    )  # (1, O_pad) f32

    return dict(
        w_t=w_t, b=b, K=K, nlabel=nlabel, tk=tk, to=to, K_pad=K_pad, O_pad=O_pad
    )


# ------------------------------ forward --------------------------------------


def lg_classifier_forward(x, params):
    """out = x @ W.T + b, logits returned in float32."""
    K, nlabel = params["K"], params["nlabel"]
    tk, to = params["tk"], params["to"]
    K_pad, O_pad = params["K_pad"], params["O_pad"]
    w_t, b = params["w_t"], params["b"]

    *lead, K_in = x.shape
    assert K_in == K, "feature_size mismatch"
    N = 1
    for d in lead:
        N *= d
    N = max(N, 1)

    # Row tile grows with batch (cuts W re-streaming ~ 1/tn), sublane aligned.
    tn = min(512, _round_up(N, 8))
    N_pad = _round_up(N, tn)

    # Megacore: keep >= 2 blocks on a "parallel" axis when possible by
    # splitting the output axis (v7x shards parallel grid axes over 2 TCs).
    to_eff = to
    while (N_pad // tn) * (O_pad // to_eff) < 2 and to_eff % 256 == 0:
        to_eff //= 2

    x2 = x.reshape(N, K).astype(jnp.bfloat16)
    x2 = jnp.pad(x2, ((0, N_pad - N), (0, K_pad - K)))  # zero K-pad is exact

    n_k = K_pad // tk
    grid_ij = (N_pad // tn, O_pad // to_eff)

    # Double-buffered tile footprint; only override the scoped default when
    # we actually need more (never request the whole chip's VMEM).
    tile_bytes = 2 * (
        tn * tk * 2 + tk * to_eff * 2 + 8 * to_eff * 4 + tn * to_eff * 4
    )
    vmem_limit = int(tile_bytes * 1.5) if tile_bytes > (28 << 20) else None

    if n_k == 1:
        out = pl.pallas_call(
            _linear_bias_kernel,
            out_shape=jax.ShapeDtypeStruct((N_pad, O_pad), jnp.float32),
            grid_spec=pltpu.PrefetchScalarGridSpec(
                num_scalar_prefetch=0,
                grid=grid_ij,
                in_specs=[
                    pl.BlockSpec((tn, tk), lambda i, j: (i, 0)),      # x tile
                    pl.BlockSpec((tk, to_eff), lambda i, j: (0, j)),  # W tile
                    pl.BlockSpec((1, to_eff), lambda i, j: (0, j)),   # bias
                ],
                out_specs=pl.BlockSpec((tn, to_eff), lambda i, j: (i, j)),
            ),
            compiler_params=pltpu.CompilerParams(
                dimension_semantics=("parallel", "parallel"),
                vmem_limit_bytes=vmem_limit,
            ),
        )(x2, w_t, b)
    else:
        out = pl.pallas_call(
            _linear_bias_kernel_ksplit,
            out_shape=jax.ShapeDtypeStruct((N_pad, O_pad), jnp.float32),
            grid_spec=pltpu.PrefetchScalarGridSpec(
                num_scalar_prefetch=0,
                grid=grid_ij + (n_k,),
                in_specs=[
                    pl.BlockSpec((tn, tk), lambda i, j, k: (i, k)),      # x
                    pl.BlockSpec((tk, to_eff), lambda i, j, k: (k, j)),  # W
                    pl.BlockSpec((1, to_eff), lambda i, j, k: (0, j)),   # bias
                ],
                out_specs=pl.BlockSpec((tn, to_eff), lambda i, j, k: (i, j)),
            ),
            compiler_params=pltpu.CompilerParams(
                dimension_semantics=("parallel", "parallel", "arbitrary"),
                vmem_limit_bytes=vmem_limit,
            ),
        )(x2, w_t, b)

    if N_pad != N or O_pad != nlabel:
        out = out[:N, :nlabel]
    return out.reshape(*lead, nlabel)


if __name__ == "__main__":
    # Small config consistent with the module: batch=2, feature_size=32, nlabel=10.
    batch = 2
    feature_size = 32
    nlabel = 10

    key = jax.random.PRNGKey(0)
    k_x, k_w, k_b = jax.random.split(key, 3)

    x = jax.random.normal(k_x, (batch, feature_size), jnp.float32)
    # kaiming_normal-ish init (std = sqrt(2 / fan_in)); exact init scheme does
    # not affect forward-pass semantics.
    weight = jax.random.normal(k_w, (nlabel, feature_size), jnp.float32) * jnp.sqrt(
        2.0 / feature_size
    )
    bound = 1.0 / jnp.sqrt(feature_size)
    bias = jax.random.uniform(k_b, (nlabel,), jnp.float32, -bound, bound)

    params = prepare_lg_classifier(weight, bias)   # one-time weight prep
    out = lg_classifier_forward(x, params)
    out = jax.block_until_ready(out)

    # Pure-JAX reference with the same bf16 input rounding (f32 accumulation).
    x_bf = x.astype(jnp.bfloat16).astype(jnp.float32)
    w_bf = weight.astype(jnp.bfloat16).astype(jnp.float32)
    ref = x_bf @ w_bf.T + bias
    assert out.shape == (batch, nlabel)
    assert jnp.allclose(out, ref, atol=1e-4, rtol=1e-4)

    print("KERNEL_OK")
</pallas_src>

<mosaic_0001>
module attributes {stable_mosaic.version = 11 : i64} {
  func.func @_linear_bias_kernel(%arg0: i32, %arg1: i32, %arg2: memref<8x128xbf16, #tpu.memory_space<vmem>>, %arg3: memref<128x128xbf16, #tpu.memory_space<vmem>>, %arg4: memref<1x128xf32, #tpu.memory_space<vmem>>, %arg5: memref<8x128xf32, #tpu.memory_space<vmem>>) attributes {dimension_semantics = [#tpu.dimension_semantics<parallel>, #tpu.dimension_semantics<parallel>], iteration_bounds = array<i64: 1, 1>, scalar_prefetch = 0 : i64, scratch_operands = 0 : i64, tpu.core_type = #tpu.core_type<tc>, window_params = [{transform_indices = @transform_0, window_bounds = array<i64: 8, 128>}, {transform_indices = @transform_1, window_bounds = array<i64: 128, 128>}, {transform_indices = @transform_2, window_bounds = array<i64: 1, 128>}, {transform_indices = @transform_3, window_bounds = array<i64: 8, 128>}]} {
    %c0 = arith.constant 0 : index
    %c0_0 = arith.constant 0 : index
    %0 = vector.load %arg2[%c0, %c0_0] : memref<8x128xbf16, #tpu.memory_space<vmem>>, vector<8x128xbf16>
    %c0_1 = arith.constant 0 : index
    %c0_2 = arith.constant 0 : index
    %1 = vector.load %arg3[%c0_1, %c0_2] : memref<128x128xbf16, #tpu.memory_space<vmem>>, vector<128x128xbf16>
    %cst = arith.constant dense<0.000000e+00> : vector<8x128xf32>
    %2 = tpu.matmul %0, %1, %cst {dimension_numbers = #tpu.dot_dimension_numbers<[1], [0], [0], [1], [0, 0, 1, 1], [], []>} : vector<8x128xbf16>, vector<128x128xbf16>, vector<8x128xf32> -> vector<8x128xf32>
    %c0_3 = arith.constant 0 : index
    %c0_4 = arith.constant 0 : index
    %3 = vector.load %arg4[%c0_3, %c0_4] : memref<1x128xf32, #tpu.memory_space<vmem>>, vector<1x128xf32>
    %4 = vector.broadcast %3 : vector<1x128xf32> to vector<8x128xf32>
    %5 = arith.addf %2, %4 : vector<8x128xf32>
    %c0_5 = arith.constant 0 : index
    %c0_6 = arith.constant 0 : index
    %6 = vector.load %arg5[%c0_5, %c0_6] : memref<8x128xf32, #tpu.memory_space<vmem>>, vector<8x128xf32>
    tpu.vector_store %arg5[%c0_5, %c0_6], %5 {strides = array<i32>} : memref<8x128xf32, #tpu.memory_space<vmem>>, vector<8x128xf32>,
    return
  }
  func.func @transform_0(%arg0: i32, %arg1: i32) -> (i32, i32) {
    %c0_i32 = arith.constant 0 : i32
    %c0_i32_0 = arith.constant 0 : i32
    return %arg0, %c0_i32 : i32, i32
  }
  func.func @transform_1(%arg0: i32, %arg1: i32) -> (i32, i32) {
    %c0_i32 = arith.constant 0 : i32
    %c0_i32_0 = arith.constant 0 : i32
    return %c0_i32, %arg1 : i32, i32
  }
  func.func @transform_2(%arg0: i32, %arg1: i32) -> (i32, i32) {
    %c0_i32 = arith.constant 0 : i32
    %c0_i32_0 = arith.constant 0 : i32
    return %c0_i32, %arg1 : i32, i32
  }
  func.func @transform_3(%arg0: i32, %arg1: i32) -> (i32, i32) {
    %c0_i32 = arith.constant 0 : i32
    return %arg0, %arg1 : i32, i32
  }
}

</mosaic_0001>

<llo_original>
// kernel: tpu_custom_call.1
$region0: #{tpu_custom_call.1}
  #allocation0 [shape = 'u32[]', space=smem, size = 0x4, offset = 0x4, fixed_abs, tag = 'smem constant byte address 0x4 - core index']
  #allocation1 [shape = 'u32[72,128]{1,0:T(1,128)}', space=vmem, size = 0x9000, scoped, tag = 'internal scratch']
  %s0 = inlined_call_operand.hbm [shape: bf16[8,128], index: 0, kind: input, shape index: {}]
  %s1 = inlined_call_operand.hbm [shape: bf16[128,128], index: 1, kind: input, shape index: {}]
  %s2 = inlined_call_operand.vmem [shape: f32[1,128], index: 2, kind: input, shape index: {}]
  %s3 = inlined_call_operand.hbm [shape: f32[8,128], index: 3, kind: output, shape index: {}]
  %s4 = sld [smem:[#allocation0]]
  $region30: #{tpu_custom_call.1} parent=0
    _
  %s6 = ssub.s32 1, %s4
  %s7 = scalar_select 0, %s6, %s4
  $region1: #{tpu_custom_call.1} parent=0
    #allocation2 [shape = 'u8[2048]{0}', space=vmem, size = 0x800, scoped, tag = 'input window, operand 0, single buffered']
    #allocation3 [shape = 's32[1]{0}', space=sflag, size = 0x4, scoped, tag = 'scoped memory for tpu_custom_call.1']
    #allocation4 [shape = 's32[1]{0}', space=sflag, size = 0x4, scoped, tag = 'scoped memory for tpu_custom_call.1']
    #allocation5 [shape = 'u8[32768]{0}', space=vmem, size = 0x8000, scoped, tag = 'input window, operand 1, single buffered']
    #allocation6 [shape = 's32[1]{0}', space=sflag, size = 0x4, scoped, tag = 'scoped memory for tpu_custom_call.1']
    #allocation7 [shape = 'u8[4096]{0}', space=vmem, size = 0x1000, scoped, tag = 'output window, operand 0, single buffered']
    %8 = vsyncpa [#allocation3], 0
    %9 = vsyncpa [#allocation6], 0
    %10 = vsyncpa [#allocation4], 0
    // Predicated region
    $region2: #{tpu_custom_call.1} parent=1 // pred_check
      _
    $region3: #{tpu_custom_call.1} parent=1 // pred_check_branch
      %12 = sbr.rel (0) target = $region5
    $region4: #{tpu_custom_call.1} parent=1 // pred_region
      %14 = vsyncadd [#allocation3], 0
      %s16 = sshll.u32 %s0, 4
      %s17 = int_to_ptr.hbm [resolvable:$true] %s16
      %s18 = sshll.u32 [#allocation2], 4
      %s19 = int_to_ptr.vmem [resolvable:$true] %s18
      %21 = dma.hbm_to_vmem [thread:$0]  %s17, 64, %s19, [#allocation3]
    $region5: #{tpu_custom_call.1} parent=1 // pred_fallthru
      _
    // Predicated region
    $region6: #{tpu_custom_call.1} parent=1 // pred_check
      _
    $region7: #{tpu_custom_call.1} parent=1 // pred_check_branch
      %23 = sbr.rel (0) target = $region9
    $region8: #{tpu_custom_call.1} parent=1 // pred_region
      %25 = vsyncadd [#allocation6], 0
      %s26 = sshll.u32 %s1, 4
      %s27 = int_to_ptr.hbm [resolvable:$true] %s26
      %s28 = sshll.u32 [#allocation5], 4
      %s29 = int_to_ptr.vmem [resolvable:$true] %s28
      %34 = dma.hbm_to_vmem [thread:$0]  %s27, 1024, %s29, [#allocation6], 64, 64, 4
    $region9: #{tpu_custom_call.1} parent=1 // pred_fallthru
      _
    // Predicated region
    $region10: #{tpu_custom_call.1} parent=1 // pred_check
      _
    $region11: #{tpu_custom_call.1} parent=1 // pred_check_branch
      %36 = sbr.rel (0) target = $region13
    $region12: #{tpu_custom_call.1} parent=1 // pred_region
      _
    $region13: #{tpu_custom_call.1} parent=1 // pred_fallthru
      _
    // Predicated region
    $region14: #{tpu_custom_call.1} parent=1 // pred_check
      _
    $region15: #{tpu_custom_call.1} parent=1 // pred_check_branch
      %38 = sbr.rel (0) target = $region17
    $region16: #{tpu_custom_call.1} parent=1 // pred_region
      %40 = dma.done [#allocation3], 64
    $region17: #{tpu_custom_call.1} parent=1 // pred_fallthru
      _
    // Predicated region
    $region18: #{tpu_custom_call.1} parent=1 // pred_check
      _
    $region19: #{tpu_custom_call.1} parent=1 // pred_check_branch
      %42 = sbr.rel (0) target = $region21
    $region20: #{tpu_custom_call.1} parent=1 // pred_region
      %44 = dma.done [#allocation6], 1024
    $region21: #{tpu_custom_call.1} parent=1 // pred_fallthru
      _
    %v45 = vld [vmem:[#allocation2] sm:$0xf]
    %v46 = vld [vmem:[#allocation5] sm:$0xf]
    %v47 = vld [vmem:[#allocation5 + $0x4] sm:$0xf]
    %v48 = vld [vmem:[#allocation5 + $0x8] sm:$0xf]
    %v49 = vld [vmem:[#allocation5 + $0xc] sm:$0xf]
    %v50 = vld [vmem:[#allocation5 + $0x10] sm:$0xf]
    %v51 = vld [vmem:[#allocation5 + $0x14] sm:$0xf]
    %v52 = vld [vmem:[#allocation5 + $0x18] sm:$0xf]
    %v53 = vld [vmem:[#allocation5 + $0x1c] sm:$0xf]
    %v54 = vld [vmem:[#allocation5 + $0x20] sm:$0xf]
    %v55 = vld [vmem:[#allocation5 + $0x24] sm:$0xf]
    %v56 = vld [vmem:[#allocation5 + $0x28] sm:$0xf]
    %v57 = vld [vmem:[#allocation5 + $0x2c] sm:$0xf]
    %v58 = vld [vmem:[#allocation5 + $0x30] sm:$0xf]
    %v59 = vld [vmem:[#allocation5 + $0x34] sm:$0xf]
    %v60 = vld [vmem:[#allocation5 + $0x38] sm:$0xf]
    %v61 = vld [vmem:[#allocation5 + $0x3c] sm:$0xf]
    %v62 = vld [vmem:[%s2] sm:$0x1]
    %v64 = vperm.slane %v62, 0
    %v82 = vunpack.c.l.b16 %v46
    %v83 = vunpack.c.l.b16 %v47
    %v84 = vunpack.c.l.b16 %v48
    %v85 = vunpack.c.l.b16 %v49
    %v86 = vunpack.c.l.b16 %v50
    %v87 = vunpack.c.l.b16 %v51
    %v88 = vunpack.c.l.b16 %v52
    %v89 = vunpack.c.l.b16 %v53
    %v90 = vunpack.c.l.b16 %v54
    %v91 = vunpack.c.l.b16 %v55
    %v92 = vunpack.c.l.b16 %v56
    %v93 = vunpack.c.l.b16 %v57
    %v94 = vunpack.c.l.b16 %v58
    %v95 = vunpack.c.l.b16 %v59
    %v96 = vunpack.c.l.b16 %v60
    %v97 = vunpack.c.l.b16 %v61
    %v98 = vpack.c.b16 %v83, %v82
    %v99 = vpack.c.b16 %v85, %v84
    %v100 = vpack.c.b16 %v87, %v86
    %v101 = vpack.c.b16 %v89, %v88
    %v102 = vpack.c.b16 %v91, %v90
    %v103 = vpack.c.b16 %v93, %v92
    %v104 = vpack.c.b16 %v95, %v94
    %v105 = vpack.c.b16 %v97, %v96
    %114 = vmatpush.bf16.msra.mxu0 %v105
    %115 = vmatpush.bf16.msra.mxu0 %v104
    %116 = vmatpush.bf16.msra.mxu0 %v103
    %117 = vmatpush.bf16.msra.mxu0 %v102
    %118 = vmatpush.bf16.msra.mxu0 %v101
    %119 = vmatpush.bf16.msra.mxu0 %v100
    %120 = vmatpush.bf16.msra.mxu0 %v99
    %121 = vmatpush.bf16.msra.mxu0 %v98
    %122 = vmatmul.bf16.gmra.mxu0 %v45
    %v123 = vpop.f32.mrf.mxu0
    %v124 = vadd.f32 %v64, %v123
    %v125 = vpop.f32.mrf.mxu0
    %126 = vdwg.mxu0
    %127 = vst [vmem:[#allocation7] sm:$0xff] %v124
    // Predicated region
    $region22: #{tpu_custom_call.1} parent=1 // pred_check
      _
    $region23: #{tpu_custom_call.1} parent=1 // pred_check_branch
      %129 = sbr.rel (0) target = $region25
    $region24: #{tpu_custom_call.1} parent=1 // pred_region
      %131 = vsyncadd [#allocation4], 0
      %s133 = sshll.u32 [#allocation7], 4
      %s134 = int_to_ptr.vmem [resolvable:$true] %s133
      %s135 = sshll.u32 %s3, 4
      %s136 = int_to_ptr.hbm [resolvable:$true] %s135
      %138 = dma.vmem_to_hbm [thread:$0]  %s134, 128, %s136, [#allocation4]
    $region25: #{tpu_custom_call.1} parent=1 // pred_fallthru
      _
    // Predicated region
    $region26: #{tpu_custom_call.1} parent=1 // pred_check
      _
    $region27: #{tpu_custom_call.1} parent=1 // pred_check_branch
      %140 = sbr.rel (0) target = $region29
    $region28: #{tpu_custom_call.1} parent=1 // pred_region
      %142 = dma.done [#allocation4], 128
    $region29: #{tpu_custom_call.1} parent=1 // pred_fallthru
      _
    %143 = vsyncpa [#allocation3], 1
    %144 = vsyncpa [#allocation6], 1
    %145 = vsyncpa [#allocation4], 1

</llo_original>
